<compile_context>
chip_gen: v5e
topology: v5e:2x2
jax: 0.10.0
libtpu: 0.0.40
codegen_flags: <defaults>
</compile_context>

<pallas_src>
import functools
from typing import NamedTuple

import jax
import jax.numpy as jnp
from jax.experimental import pallas as pl
from jax.experimental.pallas import tpu as pltpu

_MIB = 2 ** 20


def _round_up(x: int, m: int) -> int:
    return (x + m - 1) // m * m


def _cdiv(a: int, b: int) -> int:
    return (a + b - 1) // b


def _pad_dim(d: int, prefer_256: bool) -> int:
    """Lane-align a feature dim; prefer 256 (v6e/v7x MXU) when padding is cheap."""
    p128 = _round_up(d, 128)
    if prefer_256:
        p256 = _round_up(d, 256)
        if p256 == p128 or (p256 - d) * 8 <= d:  # <= 12.5% extra zero padding
            return p256
    return p128


def _chip_info():
    """Return (physical VMEM bytes, scoped-VMEM cap, prefer_256, two TCs per chip)."""
    kind = ""
    try:
        kind = jax.devices()[0].device_kind.lower()
    except Exception:
        pass
    is_v7 = ("v7" in kind) or ("7x" in kind)
    is_v5_v6 = ("v5" in kind) or ("v6" in kind)
    if is_v7:
        vmem_phys, cap, prefer_256, two_cores = 64 * _MIB, 48 * _MIB, True, True
    elif is_v5_v6:
        vmem_phys, cap = 128 * _MIB, 100 * _MIB
        prefer_256 = "v6" in kind            # v5e MXU is 128x128: 128 is optimal
        two_cores = False
    else:                                    # unknown chip: be conservative
        vmem_phys, cap, prefer_256, two_cores = 64 * _MIB, 48 * _MIB, False, False
    try:  # refine with the real VMEM capacity when the query is available
        v = getattr(pltpu.get_tpu_info(), "vmem_capacity_bytes", None)
        if v:
            vmem_phys = int(v)
            cap = min(cap, int(0.80 * vmem_phys))
    except Exception:
        pass
    return vmem_phys, cap, prefer_256, two_cores


class FFNPlan(NamedTuple):
    mode: str          # "resident" | "chunked"
    tm: int            # max row (token) tile; clamped to M at apply time
    tk: int            # d_ff tile (== d_ff_p in resident mode)
    d_in_p: int
    d_ff_p: int
    d_out_p: int
    d_out: int
    vmem_limit: int
    two_cores: bool


def _resident_bytes(tm, d_in_p, d_ff_p, d_out_p, out_isz=4):
    # Weights conservatively counted double-buffered (Pallas allocates 2 bufs
    # per input spec even though constant index maps are only DMA'd once).
    return (2 * tm * d_in_p * 2            # x tiles (bf16), double-buffered
            + 2 * d_in_p * d_ff_p * 2      # W1 (bf16)
            + 2 * d_ff_p * d_out_p * 2     # W2 (bf16)
            + 2 * d_ff_p * 4               # b1 (f32)
            + 2 * d_out_p * 4              # b2 (f32)
            + 2 * tm * d_out_p * out_isz   # output tiles, double-buffered
            + tm * d_ff_p * (4 + 2))       # f32 hidden intermediate + bf16 cast


def _chunked_bytes(tm, tk, d_in_p, d_out_p, out_isz=4):
    return (2 * tm * d_in_p * 2            # x tiles (bf16)
            + 2 * d_in_p * tk * 2          # W1 slabs (bf16)
            + 2 * tk * 4                   # b1 chunks (f32)
            + 2 * tk * d_out_p * 2         # W2 slabs (bf16)
            + 2 * d_out_p * 4              # b2 (f32)
            + 2 * tm * d_out_p * out_isz   # output tiles
            + tm * d_out_p * 4             # f32 accumulator scratch
            + tm * tk * (4 + 2))           # f32 hidden chunk + bf16 cast


def _plan(d_in: int, d_ff: int, d_out: int, tm_req: int, tk_req: int) -> FFNPlan:
    vmem_phys, cap, prefer_256, two_cores = _chip_info()
    d_in_p = _pad_dim(d_in, prefer_256)
    d_out_p = _pad_dim(d_out, prefer_256)
    tm0 = max(16, _round_up(tm_req, 16))

    # --- Resident-weights fast path: W1/W2 DMA'd from HBM exactly once. ---
    d_ff_res = _pad_dim(d_ff, prefer_256)
    budget_res = min(int(0.55 * vmem_phys), cap)
    for tm_try in (tm0, tm0 // 2, tm0 // 4, 128):
        tm_try = max(16, _round_up(tm_try, 16))
        need = _resident_bytes(tm_try, d_in_p, d_ff_res, d_out_p)
        if need <= budget_res:
            limit = min(cap, max(int(1.25 * need), 16 * _MIB))
            return FFNPlan("resident", tm_try, d_ff_res, d_in_p, d_ff_res,
                           d_out_p, d_out, limit, two_cores)

    # --- Chunked fallback: stream W1/W2 slabs over an inner "arbitrary" axis. ---
    budget_ch = min(int(0.70 * vmem_phys), cap)
    tk0 = max(128, _round_up(min(tk_req, _round_up(d_ff, 128)), 128))
    for tm_try in (tm0, tm0 // 2, tm0 // 4, 128):
        tm_try = max(16, _round_up(tm_try, 16))
        for tk_try in (tk0, tk0 // 2, 256, 128):
            tk_try = max(128, _round_up(tk_try, 128))
            need = _chunked_bytes(tm_try, tk_try, d_in_p, d_out_p)
            if need <= budget_ch:
                d_ff_p = _round_up(d_ff, tk_try)
                limit = min(cap, max(int(1.25 * need), 16 * _MIB))
                return FFNPlan("chunked", tm_try, tk_try, d_in_p, d_ff_p,
                               d_out_p, d_out, limit, two_cores)

    # Last resort: minimum tiles, modest scoped-VMEM request.
    return FFNPlan("chunked", 128, 128, d_in_p, _round_up(d_ff, 128),
                   d_out_p, d_out, min(cap, 32 * _MIB), two_cores)


# ----------------------------- kernels ------------------------------------


def _ffn_kernel_resident(x_ref, w1_ref, b1_ref, w2_ref, b2_ref, o_ref):
    # Weights are fully resident (constant index maps): one HBM read total.
    h = jnp.dot(x_ref[...], w1_ref[...], preferred_element_type=jnp.float32)
    h = jnp.maximum(h + b1_ref[...], 0.0)
    # TODO(synk): training-mode dropout (p=0.1) omitted; eval-mode identity.
    y = jnp.dot(h.astype(w2_ref.dtype), w2_ref[...],
                preferred_element_type=jnp.float32)
    o_ref[...] = (y + b2_ref[...]).astype(o_ref.dtype)


def _ffn_kernel_chunked(x_ref, w1_ref, b1_ref, w2_ref, b2_ref, o_ref, acc_ref):
    # d_ff is tiled on the inner grid axis; the f32 accumulator is resident.
    k = pl.program_id(1)

    @pl.when(k == 0)
    def _init():
        acc_ref[...] = jnp.zeros_like(acc_ref)

    h = jnp.dot(x_ref[...], w1_ref[...], preferred_element_type=jnp.float32)
    h = jnp.maximum(h + b1_ref[...], 0.0)   # ReLU is elementwise in d_ff: exact
    acc_ref[...] += jnp.dot(h.astype(w2_ref.dtype), w2_ref[...],
                            preferred_element_type=jnp.float32)

    @pl.when(k == pl.num_programs(1) - 1)
    def _finalize():
        o_ref[...] = (acc_ref[...] + b2_ref[...]).astype(o_ref.dtype)


# --------------------------- jitted apply ----------------------------------


@functools.partial(jax.jit, static_argnames=("plan",))
def _ffn_apply(x, w1p, b1p, w2p, b2p, plan: FFNPlan):
    n, s, d_in = x.shape
    M = n * s
    out_isz = jnp.dtype(x.dtype).itemsize
    d_in_p, d_ff_p, d_out_p = plan.d_in_p, plan.d_ff_p, plan.d_out_p

    # Row tile: big (MXU/DMA efficiency), bf16-sublane aligned (16), clamped
    # to the padded M; shrunk on v7x so both TensorCores get parallel tiles.
    tm = max(16, _round_up(min(plan.tm, _round_up(M, 16)), 16))
    if plan.two_cores:
        while tm > 128 and _cdiv(M, tm) < 2:
            tm = max(16, _round_up(tm // 2, 16))
    M_p = _round_up(M, tm)
    m_tiles = M_p // tm

    x2d = jnp.pad(x.reshape(M, d_in),
                  ((0, M_p - M), (0, d_in_p - d_in))).astype(jnp.bfloat16)

    w_bytes = (w1p.size + w2p.size) * 2 + (b1p.size + b2p.size) * 4
    w_reads = 1 if plan.mode == "resident" else m_tiles
    cost = pl.CostEstimate(
        flops=2 * M_p * (d_in_p * d_ff_p + d_ff_p * d_out_p),
        transcendentals=0,
        bytes_accessed=x2d.size * 2 + w_bytes * w_reads + M_p * d_out_p * out_isz,
    )

    if plan.mode == "resident":
        grid = (m_tiles,)
        in_specs = [
            pl.BlockSpec((tm, d_in_p), lambda i: (i, 0)),          # x tile
            pl.BlockSpec((d_in_p, d_ff_p), lambda i: (0, 0)),      # W1 (once)
            pl.BlockSpec((1, d_ff_p), lambda i: (0, 0)),           # b1
            pl.BlockSpec((d_ff_p, d_out_p), lambda i: (0, 0)),     # W2 (once)
            pl.BlockSpec((1, d_out_p), lambda i: (0, 0)),          # b2
        ]
        out_spec = pl.BlockSpec((tm, d_out_p), lambda i: (i, 0))
        scratch = []
        kernel = _ffn_kernel_resident
        semantics = ("parallel",)
    else:
        tk = plan.tk
        grid = (m_tiles, d_ff_p // tk)
        # Note: if profiling shows exposed weight-slab DMA on v5e/v6e, add
        # pipeline_mode=pl.Buffered(3) to the W1/W2 specs (skip on v7x).
        in_specs = [
            pl.BlockSpec((tm, d_in_p), lambda i, k: (i, 0)),       # x tile
            pl.BlockSpec((d_in_p, tk), lambda i, k: (0, k)),       # W1 slab
            pl.BlockSpec((1, tk), lambda i, k: (0, k)),            # b1 chunk
            pl.BlockSpec((tk, d_out_p), lambda i, k: (k, 0)),      # W2 slab
            pl.BlockSpec((1, d_out_p), lambda i, k: (0, 0)),       # b2
        ]
        out_spec = pl.BlockSpec((tm, d_out_p), lambda i, k: (i, 0))
        scratch = [pltpu.VMEM((tm, d_out_p), jnp.float32)]
        kernel = _ffn_kernel_chunked
        semantics = ("parallel", "arbitrary")

    out2d = pl.pallas_call(
        kernel,
        out_shape=jax.ShapeDtypeStruct((M_p, d_out_p), x.dtype),
        grid_spec=pltpu.PrefetchScalarGridSpec(
            num_scalar_prefetch=0,
            grid=grid,
            in_specs=in_specs,
            out_specs=out_spec,
            scratch_shapes=scratch,
        ),
        compiler_params=pltpu.CompilerParams(
            dimension_semantics=semantics,
            vmem_limit_bytes=int(plan.vmem_limit),
        ),
        cost_estimate=cost,
    )(x2d, w1p, b1p, w2p, b2p)

    return out2d[:M, :plan.d_out].reshape(n, s, plan.d_out)


# ----------------------------- public API ----------------------------------


def make_positionwise_ffn(w1, b1, w2, b2, *, tm=512, tk_ff=512):
    """Pad & cast the weights to bf16 ONCE; return a jitted apply(x) closure.

    w1: (d_in, d_ff), b1: (d_ff,), w2: (d_ff, d_out), b2: (d_out,)
    (Linear weights stored transposed relative to torch: (in, out).)
    """
    d_in, d_ff = w1.shape
    d_out = w2.shape[1]
    plan = _plan(d_in, d_ff, d_out, tm, tk_ff)

    # One-time prep outside the per-call jit: no per-invocation pad/cast traffic.
    w1p = jnp.pad(w1, ((0, plan.d_in_p - d_in),
                       (0, plan.d_ff_p - d_ff))).astype(jnp.bfloat16)
    w2p = jnp.pad(w2, ((0, plan.d_ff_p - d_ff),
                       (0, plan.d_out_p - d_out))).astype(jnp.bfloat16)
    b1p = jnp.pad(b1, (0, plan.d_ff_p - d_ff)).reshape(1, plan.d_ff_p).astype(jnp.float32)
    b2p = jnp.pad(b2, (0, plan.d_out_p - d_out)).reshape(1, plan.d_out_p).astype(jnp.float32)
    w1p, b1p, w2p, b2p = jax.block_until_ready((w1p, b1p, w2p, b2p))

    def apply(x):
        return _ffn_apply(x, w1p, b1p, w2p, b2p, plan)

    return apply


def positionwise_ffn(x, w1, b1, w2, b2, *, tm=512, tk_ff=512):
    """One-shot convenience wrapper (prefer make_positionwise_ffn for reuse)."""
    return make_positionwise_ffn(w1, b1, w2, b2, tm=tm, tk_ff=tk_ff)(x)


# ----------------------------- references ----------------------------------


def _reference_f32(x, w1, b1, w2, b2):
    h = jnp.maximum(jnp.einsum("nsd,df->nsf", x, w1) + b1, 0.0)
    return jnp.einsum("nsf,fo->nso", h, w2) + b2


def _reference_bf16(x, w1, b1, w2, b2):
    # Mimics the kernel's numerics: bf16 operands, f32 accumulation.
    n, s, d_in = x.shape
    xb = x.reshape(-1, d_in).astype(jnp.bfloat16)
    h = jnp.dot(xb, w1.astype(jnp.bfloat16),
                preferred_element_type=jnp.float32) + b1
    h = jnp.maximum(h, 0.0)
    y = jnp.dot(h.astype(jnp.bfloat16), w2.astype(jnp.bfloat16),
                preferred_element_type=jnp.float32) + b2
    return y.reshape(n, s, -1).astype(x.dtype)


if __name__ == "__main__":
    # Small shapes consistent with the module's forward:
    n, seq_len = 2, 8
    d_model_in, d_ff, d_model_out = 32, 64, 32

    key = jax.random.PRNGKey(0)
    kx, k1, kb1, k2, kb2 = jax.random.split(key, 5)

    x = jax.random.normal(kx, (n, seq_len, d_model_in), dtype=jnp.float32)
    w1 = jax.random.normal(k1, (d_model_in, d_ff), dtype=jnp.float32) * (1.0 / d_model_in ** 0.5)
    b1 = jax.random.normal(kb1, (d_ff,), dtype=jnp.float32) * 0.01
    w2 = jax.random.normal(k2, (d_ff, d_model_out), dtype=jnp.float32) * (1.0 / d_ff ** 0.5)
    b2 = jax.random.normal(kb2, (d_model_out,), dtype=jnp.float32) * 0.01

    ffn = make_positionwise_ffn(w1, b1, w2, b2)
    out = jax.block_until_ready(ffn(x))
    assert out.shape == (n, seq_len, d_model_out)

    # Tight check against a bf16/f32-accumulate reference ...
    ref_bf16 = _reference_bf16(x, w1, b1, w2, b2)
    assert jnp.allclose(out, ref_bf16, atol=2e-2, rtol=2e-2)
    # ... and a looser sanity check against the pure-f32 module semantics.
    ref_f32 = _reference_f32(x, w1, b1, w2, b2)
    assert jnp.allclose(out, ref_f32, atol=1e-1, rtol=1e-1)

    print("KERNEL_OK")
</pallas_src>

<mosaic_0001>
module attributes {stable_mosaic.version = 11 : i64} {
  func.func @_ffn_kernel_resident(%arg0: i32, %arg1: memref<16x128xbf16, #tpu.memory_space<vmem>>, %arg2: memref<128x128xbf16, #tpu.memory_space<vmem>>, %arg3: memref<1x128xf32, #tpu.memory_space<vmem>>, %arg4: memref<128x128xbf16, #tpu.memory_space<vmem>>, %arg5: memref<1x128xf32, #tpu.memory_space<vmem>>, %arg6: memref<16x128xf32, #tpu.memory_space<vmem>>) attributes {dimension_semantics = [#tpu.dimension_semantics<parallel>], iteration_bounds = array<i64: 1>, scalar_prefetch = 0 : i64, scratch_operands = 0 : i64, tpu.core_type = #tpu.core_type<tc>, window_params = [{transform_indices = @transform_0, window_bounds = array<i64: 16, 128>}, {pipeline_mode = #tpu.pipeline_mode<synchronous>, transform_indices = @transform_1, window_bounds = array<i64: 128, 128>}, {pipeline_mode = #tpu.pipeline_mode<synchronous>, transform_indices = @transform_2, window_bounds = array<i64: 1, 128>}, {pipeline_mode = #tpu.pipeline_mode<synchronous>, transform_indices = @transform_3, window_bounds = array<i64: 128, 128>}, {pipeline_mode = #tpu.pipeline_mode<synchronous>, transform_indices = @transform_4, window_bounds = array<i64: 1, 128>}, {transform_indices = @transform_5, window_bounds = array<i64: 16, 128>}]} {
    %c0 = arith.constant 0 : index
    %c0_0 = arith.constant 0 : index
    %0 = vector.load %arg1[%c0, %c0_0] : memref<16x128xbf16, #tpu.memory_space<vmem>>, vector<16x128xbf16>
    %c0_1 = arith.constant 0 : index
    %c0_2 = arith.constant 0 : index
    %1 = vector.load %arg2[%c0_1, %c0_2] : memref<128x128xbf16, #tpu.memory_space<vmem>>, vector<128x128xbf16>
    %cst = arith.constant dense<0.000000e+00> : vector<16x128xf32>
    %2 = tpu.matmul %0, %1, %cst {dimension_numbers = #tpu.dot_dimension_numbers<[1], [0], [0], [1], [0, 0, 1, 1], [], []>} : vector<16x128xbf16>, vector<128x128xbf16>, vector<16x128xf32> -> vector<16x128xf32>
    %c0_3 = arith.constant 0 : index
    %c0_4 = arith.constant 0 : index
    %3 = vector.load %arg3[%c0_3, %c0_4] : memref<1x128xf32, #tpu.memory_space<vmem>>, vector<1x128xf32>
    %4 = vector.broadcast %3 : vector<1x128xf32> to vector<16x128xf32>
    %5 = arith.addf %2, %4 : vector<16x128xf32>
    %cst_5 = arith.constant 0.000000e+00 : f32
    %6 = vector.broadcast %cst_5 : f32 to vector<16x128xf32>
    %7 = arith.maximumf %5, %6 : vector<16x128xf32>
    %8 = arith.truncf %7 : vector<16x128xf32> to vector<16x128xbf16>
    %c0_6 = arith.constant 0 : index
    %c0_7 = arith.constant 0 : index
    %9 = vector.load %arg4[%c0_6, %c0_7] : memref<128x128xbf16, #tpu.memory_space<vmem>>, vector<128x128xbf16>
    %cst_8 = arith.constant dense<0.000000e+00> : vector<16x128xf32>
    %10 = tpu.matmul %8, %9, %cst_8 {dimension_numbers = #tpu.dot_dimension_numbers<[1], [0], [0], [1], [0, 0, 1, 1], [], []>} : vector<16x128xbf16>, vector<128x128xbf16>, vector<16x128xf32> -> vector<16x128xf32>
    %c0_9 = arith.constant 0 : index
    %c0_10 = arith.constant 0 : index
    %11 = vector.load %arg5[%c0_9, %c0_10] : memref<1x128xf32, #tpu.memory_space<vmem>>, vector<1x128xf32>
    %12 = vector.broadcast %11 : vector<1x128xf32> to vector<16x128xf32>
    %13 = arith.addf %10, %12 : vector<16x128xf32>
    %c0_11 = arith.constant 0 : index
    %c0_12 = arith.constant 0 : index
    %14 = vector.load %arg6[%c0_11, %c0_12] : memref<16x128xf32, #tpu.memory_space<vmem>>, vector<16x128xf32>
    tpu.vector_store %arg6[%c0_11, %c0_12], %13 {strides = array<i32>} : memref<16x128xf32, #tpu.memory_space<vmem>>, vector<16x128xf32>,
    return
  }
  func.func @transform_0(%arg0: i32) -> (i32, i32) {
    %c0_i32 = arith.constant 0 : i32
    %c0_i32_0 = arith.constant 0 : i32
    return %arg0, %c0_i32 : i32, i32
  }
  func.func @transform_1(%arg0: i32) -> (i32, i32) {
    %c0_i32 = arith.constant 0 : i32
    %c0_i32_0 = arith.constant 0 : i32
    %c0_i32_1 = arith.constant 0 : i32
    return %c0_i32, %c0_i32_0 : i32, i32
  }
  func.func @transform_2(%arg0: i32) -> (i32, i32) {
    %c0_i32 = arith.constant 0 : i32
    %c0_i32_0 = arith.constant 0 : i32
    %c0_i32_1 = arith.constant 0 : i32
    return %c0_i32, %c0_i32_0 : i32, i32
  }
  func.func @transform_3(%arg0: i32) -> (i32, i32) {
    %c0_i32 = arith.constant 0 : i32
    %c0_i32_0 = arith.constant 0 : i32
    %c0_i32_1 = arith.constant 0 : i32
    return %c0_i32, %c0_i32_0 : i32, i32
  }
  func.func @transform_4(%arg0: i32) -> (i32, i32) {
    %c0_i32 = arith.constant 0 : i32
    %c0_i32_0 = arith.constant 0 : i32
    %c0_i32_1 = arith.constant 0 : i32
    return %c0_i32, %c0_i32_0 : i32, i32
  }
  func.func @transform_5(%arg0: i32) -> (i32, i32) {
    %c0_i32 = arith.constant 0 : i32
    %c0_i32_0 = arith.constant 0 : i32
    return %arg0, %c0_i32 : i32, i32
  }
}

</mosaic_0001>

<llo_original>
// kernel: _ffn_apply.1
$region0: #{_ffn_apply.1}
  #allocation0 [shape = 'u32[]', space=smem, size = 0x4, offset = 0x4, fixed_abs, tag = 'smem constant byte address 0x4 - core index']
  #allocation1 [shape = 'u32[72,128]{1,0:T(1,128)}', space=vmem, size = 0x9000, scoped, tag = 'internal scratch']
  %s0 = inlined_call_operand.vmem [shape: bf16[16,128], index: 0, kind: input, shape index: {}]
  %s1 = inlined_call_operand.hbm [shape: bf16[128,128], index: 1, kind: input, shape index: {}]
  %s2 = inlined_call_operand.vmem [shape: f32[1,128], index: 2, kind: input, shape index: {}]
  %s3 = inlined_call_operand.hbm [shape: bf16[128,128], index: 3, kind: input, shape index: {}]
  %s4 = inlined_call_operand.vmem [shape: f32[1,128], index: 4, kind: input, shape index: {}]
  %s5 = inlined_call_operand.vmem [shape: f32[16,128], index: 5, kind: output, shape index: {}]
  %s6 = sld [smem:[#allocation0]]
  $region38: #{_ffn_apply.1} parent=0
    _
  %s8 = ssub.s32 1, %s6
  %s9 = scalar_select 0, %s8, %s6
  $region1: #{_ffn_apply.1} parent=0
    #allocation2 [shape = 'u8[32768]{0}', space=vmem, size = 0x8000, scoped, tag = 'input window, operand 1, single buffered']
    #allocation3 [shape = 's32[1]{0}', space=sflag, size = 0x4, scoped, tag = 'scoped memory for _ffn_apply.1']
    #allocation4 [shape = 'u8[32768]{0}', space=vmem, size = 0x8000, scoped, tag = 'input window, operand 3, single buffered']
    #allocation5 [shape = 's32[1]{0}', space=sflag, size = 0x4, scoped, tag = 'scoped memory for _ffn_apply.1']
    %10 = vsyncpa [#allocation3], 0
    %11 = vsyncpa [#allocation5], 0
    // Predicated region
    $region2: #{_ffn_apply.1} parent=1 // pred_check
      _
    $region3: #{_ffn_apply.1} parent=1 // pred_check_branch
      %13 = sbr.rel (0) target = $region5
    $region4: #{_ffn_apply.1} parent=1 // pred_region
      _
    $region5: #{_ffn_apply.1} parent=1 // pred_fallthru
      _
    // Predicated region
    $region6: #{_ffn_apply.1} parent=1 // pred_check
      _
    $region7: #{_ffn_apply.1} parent=1 // pred_check_branch
      %15 = sbr.rel (0) target = $region9
    $region8: #{_ffn_apply.1} parent=1 // pred_region
      %17 = vsyncadd [#allocation3], 0
      %s18 = sshll.u32 %s1, 4
      %s19 = int_to_ptr.hbm [resolvable:$true] %s18
      %s20 = sshll.u32 [#allocation2], 4
      %s21 = int_to_ptr.vmem [resolvable:$true] %s20
      %26 = dma.hbm_to_vmem [thread:$0]  %s19, 1024, %s21, [#allocation3], 64, 64, 4
    $region9: #{_ffn_apply.1} parent=1 // pred_fallthru
      _
    // Predicated region
    $region10: #{_ffn_apply.1} parent=1 // pred_check
      _
    $region11: #{_ffn_apply.1} parent=1 // pred_check_branch
      %28 = sbr.rel (0) target = $region13
    $region12: #{_ffn_apply.1} parent=1 // pred_region
      _
    $region13: #{_ffn_apply.1} parent=1 // pred_fallthru
      _
    // Predicated region
    $region14: #{_ffn_apply.1} parent=1 // pred_check
      _
    $region15: #{_ffn_apply.1} parent=1 // pred_check_branch
      %30 = sbr.rel (0) target = $region17
    $region16: #{_ffn_apply.1} parent=1 // pred_region
      %32 = vsyncadd [#allocation5], 0
      %s33 = sshll.u32 %s3, 4
      %s34 = int_to_ptr.hbm [resolvable:$true] %s33
      %s35 = sshll.u32 [#allocation4], 4
      %s36 = int_to_ptr.vmem [resolvable:$true] %s35
      %41 = dma.hbm_to_vmem [thread:$0]  %s34, 1024, %s36, [#allocation5], 64, 64, 4
    $region17: #{_ffn_apply.1} parent=1 // pred_fallthru
      _
    // Predicated region
    $region18: #{_ffn_apply.1} parent=1 // pred_check
      _
    $region19: #{_ffn_apply.1} parent=1 // pred_check_branch
      %43 = sbr.rel (0) target = $region21
    $region20: #{_ffn_apply.1} parent=1 // pred_region
      _
    $region21: #{_ffn_apply.1} parent=1 // pred_fallthru
      _
    // Predicated region
    $region22: #{_ffn_apply.1} parent=1 // pred_check
      _
    $region23: #{_ffn_apply.1} parent=1 // pred_check_branch
      %45 = sbr.rel (0) target = $region25
    $region24: #{_ffn_apply.1} parent=1 // pred_region
      %47 = dma.done [#allocation3], 1024
    $region25: #{_ffn_apply.1} parent=1 // pred_fallthru
      _
    // Predicated region
    $region26: #{_ffn_apply.1} parent=1 // pred_check
      _
    $region27: #{_ffn_apply.1} parent=1 // pred_check_branch
      %49 = sbr.rel (0) target = $region29
    $region28: #{_ffn_apply.1} parent=1 // pred_region
      %51 = dma.done [#allocation5], 1024
    $region29: #{_ffn_apply.1} parent=1 // pred_fallthru
      _
    %v52 = vld [vmem:[%s0] sm:$0xf]
    %v53 = vld [vmem:[%s0 + $0x4] sm:$0xf]
    %v54 = vld [vmem:[#allocation2] sm:$0xf]
    %v55 = vld [vmem:[#allocation2 + $0x4] sm:$0xf]
    %v56 = vld [vmem:[#allocation2 + $0x8] sm:$0xf]
    %v57 = vld [vmem:[#allocation2 + $0xc] sm:$0xf]
    %v58 = vld [vmem:[#allocation2 + $0x10] sm:$0xf]
    %v59 = vld [vmem:[#allocation2 + $0x14] sm:$0xf]
    %v60 = vld [vmem:[#allocation2 + $0x18] sm:$0xf]
    %v61 = vld [vmem:[#allocation2 + $0x1c] sm:$0xf]
    %v62 = vld [vmem:[#allocation2 + $0x20] sm:$0xf]
    %v63 = vld [vmem:[#allocation2 + $0x24] sm:$0xf]
    %v64 = vld [vmem:[#allocation2 + $0x28] sm:$0xf]
    %v65 = vld [vmem:[#allocation2 + $0x2c] sm:$0xf]
    %v66 = vld [vmem:[#allocation2 + $0x30] sm:$0xf]
    %v67 = vld [vmem:[#allocation2 + $0x34] sm:$0xf]
    %v68 = vld [vmem:[#allocation2 + $0x38] sm:$0xf]
    %v69 = vld [vmem:[#allocation2 + $0x3c] sm:$0xf]
    %v70 = vld [vmem:[%s2] sm:$0x1]
    %v72 = vperm.slane %v70, 0
    %v76 = vunpack.c.l.b16 %v52
    %v77 = vunpack.c.l.b16 %v53
    %v78 = vpack.c.b16 %v77, %v76
    %v96 = vunpack.c.l.b16 %v54
    %v97 = vunpack.c.l.b16 %v55
    %v98 = vunpack.c.l.b16 %v56
    %v99 = vunpack.c.l.b16 %v57
    %v100 = vunpack.c.l.b16 %v58
    %v101 = vunpack.c.l.b16 %v59
    %v102 = vunpack.c.l.b16 %v60
    %v103 = vunpack.c.l.b16 %v61
    %v104 = vunpack.c.l.b16 %v62
    %v105 = vunpack.c.l.b16 %v63
    %v106 = vunpack.c.l.b16 %v64
    %v107 = vunpack.c.l.b16 %v65
    %v108 = vunpack.c.l.b16 %v66
    %v109 = vunpack.c.l.b16 %v67
    %v110 = vunpack.c.l.b16 %v68
    %v111 = vunpack.c.l.b16 %v69
    %v112 = vpack.c.b16 %v97, %v96
    %v113 = vpack.c.b16 %v99, %v98
    %v114 = vpack.c.b16 %v101, %v100
    %v115 = vpack.c.b16 %v103, %v102
    %v116 = vpack.c.b16 %v105, %v104
    %v117 = vpack.c.b16 %v107, %v106
    %v118 = vpack.c.b16 %v109, %v108
    %v119 = vpack.c.b16 %v111, %v110
    %128 = vmatpush.bf16.msra.mxu0 %v119
    %129 = vmatpush.bf16.msra.mxu0 %v118
    %130 = vmatpush.bf16.msra.mxu0 %v117
    %131 = vmatpush.bf16.msra.mxu0 %v116
    %132 = vmatpush.bf16.msra.mxu0 %v115
    %133 = vmatpush.bf16.msra.mxu0 %v114
    %134 = vmatpush.bf16.msra.mxu0 %v113
    %135 = vmatpush.bf16.msra.mxu0 %v112
    %136 = vmatmul.bf16.gmra.mxu0 %v78
    %v137 = vpop.f32.mrf.mxu0
    %v138 = vadd.f32 %v72, %v137
    %v139 = vpop.f32.mrf.mxu0
    %v140 = vadd.f32 %v72, %v139
    %141 = vdwg.mxu0
    %v142 = vmax.f32 %v138, 0.0
    %v143 = vmax.f32 %v140, 0.0
    %v144 = vpack.c.bf16 %v143, %v142
    %v145 = vld [vmem:[#allocation4] sm:$0xf]
    %v146 = vld [vmem:[#allocation4 + $0x4] sm:$0xf]
    %v147 = vld [vmem:[#allocation4 + $0x8] sm:$0xf]
    %v148 = vld [vmem:[#allocation4 + $0xc] sm:$0xf]
    %v149 = vld [vmem:[#allocation4 + $0x10] sm:$0xf]
    %v150 = vld [vmem:[#allocation4 + $0x14] sm:$0xf]
    %v151 = vld [vmem:[#allocation4 + $0x18] sm:$0xf]
    %v152 = vld [vmem:[#allocation4 + $0x1c] sm:$0xf]
    %v153 = vld [vmem:[#allocation4 + $0x20] sm:$0xf]
    %v154 = vld [vmem:[#allocation4 + $0x24] sm:$0xf]
    %v155 = vld [vmem:[#allocation4 + $0x28] sm:$0xf]
    %v156 = vld [vmem:[#allocation4 + $0x2c] sm:$0xf]
    %v157 = vld [vmem:[#allocation4 + $0x30] sm:$0xf]
    %v158 = vld [vmem:[#allocation4 + $0x34] sm:$0xf]
    %v159 = vld [vmem:[#allocation4 + $0x38] sm:$0xf]
    %v160 = vld [vmem:[#allocation4 + $0x3c] sm:$0xf]
    %v161 = vld [vmem:[%s4] sm:$0x1]
    %v163 = vperm.slane %v161, 0
    %v181 = vunpack.c.l.b16 %v145
    %v182 = vunpack.c.l.b16 %v146
    %v183 = vunpack.c.l.b16 %v147
    %v184 = vunpack.c.l.b16 %v148
    %v185 = vunpack.c.l.b16 %v149
    %v186 = vunpack.c.l.b16 %v150
    %v187 = vunpack.c.l.b16 %v151
    %v188 = vunpack.c.l.b16 %v152
    %v189 = vunpack.c.l.b16 %v153
    %v190 = vunpack.c.l.b16 %v154
    %v191 = vunpack.c.l.b16 %v155
    %v192 = vunpack.c.l.b16 %v156
    %v193 = vunpack.c.l.b16 %v157
    %v194 = vunpack.c.l.b16 %v158
    %v195 = vunpack.c.l.b16 %v159
    %v196 = vunpack.c.l.b16 %v160
    %v197 = vpack.c.b16 %v182, %v181
    %v198 = vpack.c.b16 %v184, %v183
    %v199 = vpack.c.b16 %v186, %v185
    %v200 = vpack.c.b16 %v188, %v187
    %v201 = vpack.c.b16 %v190, %v189
    %v202 = vpack.c.b16 %v192, %v191
    %v203 = vpack.c.b16 %v194, %v193
    %v204 = vpack.c.b16 %v196, %v195
    %213 = vmatpush.bf16.msra.mxu0 %v204
    %214 = vmatpush.bf16.msra.mxu0 %v203
    %215 = vmatpush.bf16.msra.mxu0 %v202
    %216 = vmatpush.bf16.msra.mxu0 %v201
    %217 = vmatpush.bf16.msra.mxu0 %v200
    %218 = vmatpush.bf16.msra.mxu0 %v199
    %219 = vmatpush.bf16.msra.mxu0 %v198
    %220 = vmatpush.bf16.msra.mxu0 %v197
    %221 = vmatmul.bf16.gmra.mxu0 %v144
    %v222 = vpop.f32.mrf.mxu0
    %v223 = vadd.f32 %v163, %v222
    %v224 = vpop.f32.mrf.mxu0
    %v225 = vadd.f32 %v163, %v224
    %226 = vdwg.mxu0
    %227 = vst [vmem:[%s5] sm:$0xff] %v223
    %228 = vst [vmem:[%s5 + $0x8] sm:$0xff] %v225
    // Predicated region
    $region30: #{_ffn_apply.1} parent=1 // pred_check
      _
    $region31: #{_ffn_apply.1} parent=1 // pred_check_branch
      %230 = sbr.rel (0) target = $region33
    $region32: #{_ffn_apply.1} parent=1 // pred_region
      _
    $region33: #{_ffn_apply.1} parent=1 // pred_fallthru
      _
    // Predicated region
    $region34: #{_ffn_apply.1} parent=1 // pred_check
      _
    $region35: #{_ffn_apply.1} parent=1 // pred_check_branch
      %232 = sbr.rel (0) target = $region37
    $region36: #{_ffn_apply.1} parent=1 // pred_region
      _
    $region37: #{_ffn_apply.1} parent=1 // pred_fallthru
      _
    %233 = vsyncpa [#allocation3], 1
    %234 = vsyncpa [#allocation5], 1

</llo_original>
